<compile_context>
chip_gen: v6e
topology: v6e:2x2x1
jax: 0.10.0
libtpu: 0.0.40
codegen_flags: <defaults>
</compile_context>

<pallas_src>
import functools
import math

import jax
import jax.numpy as jnp
from jax.experimental import pallas as pl
from jax.experimental.pallas import tpu as pltpu


def _pair(v):
    if isinstance(v, (tuple, list)):
        return tuple(v)
    return (v, v)


def _round_up(a, b):
    return -(-a // b) * b


def _axis_plan(in_size, out_size, k, s, p, d):
    """Per-axis polyphase bookkeeping for conv_transpose.

    For an output index o with residue r = (o + p) % s only taps kk with
    (kk*d) % s == r contribute; they read input index j + e(kk) where
    o = o0(r) + j*s and e(kk) = (o0(r) + p - kk*d) // s (exact division).
    """
    r_of = [(kk * d) % s for kk in range(k)]            # residue of each tap
    o0 = [(r - p) % s for r in range(s)]                # first output index per residue
    e = [(o0[r_of[kk]] + p - kk * d) // s for kk in range(k)]
    e_min = min(e)
    a = [ei - e_min for ei in e]                        # non-negative slot offsets
    a_vals = sorted(set(a))
    a_idx = {v: i for i, v in enumerate(a_vals)}
    slot = [a_idx[ai] for ai in a]                      # per-tap slot index
    n_out = [max(0, -(-(out_size - o0[r]) // s)) for r in range(s)]
    n_max = max(n_out)
    ext = n_max + a_vals[-1]                            # padded-grid extent
    dst0 = max(0, -e_min)                               # where x[src0] lands in the grid
    src0 = max(0, e_min)
    ncpy = max(0, min(in_size - src0, ext - dst0))
    return dict(r_of=r_of, o0=o0, slot=slot, a_vals=a_vals, n_out=n_out,
                n_max=n_max, ext=ext, dst0=dst0, src0=src0, ncpy=ncpy)


def _convt_kernel(xc_ref, x_any, w_ref, o_ref, hbuf, sem, rhs_ref, *,
                  offs, tm, halo, cin, need_halo):
    """One (batch, m-tile) step.

    xc_ref : (1, Cin, tm)        auto-pipelined flat-input block (fetched once)
    x_any  : (N, Cin, L)  HBM    alias of the same flat input (halo source)
    w_ref  : (Crows_pad, nT*Cin) phase-folded packed weight (VMEM resident)
    o_ref  : (1, Crows_pad, tm)  lane-dense wide output block
    hbuf   : (Cin, halo)         VMEM scratch for the halo tail
    sem    : DMA semaphore
    rhs_ref: (nT*Cin, tm)        VMEM scratch: im2col operand built in place
    """
    n = pl.program_id(0)
    m = pl.program_id(1)
    if need_halo:
        start = pl.multiple_of((m + 1) * tm, 128)
        cp = pltpu.make_async_copy(x_any.at[n, :, pl.ds(start, halo)], hbuf, sem)
        cp.start()
    # Main piece of every tap window comes from the already-resident block.
    for t, off in enumerate(offs):
        if off == 0:
            rhs_ref[t * cin:(t + 1) * cin, :] = xc_ref[0]
        else:
            rhs_ref[t * cin:(t + 1) * cin, :tm - off] = xc_ref[0, :, off:]
    if need_halo:
        cp.wait()
        for t, off in enumerate(offs):
            if off > 0:
                rhs_ref[t * cin:(t + 1) * cin, tm - off:] = hbuf[:, :off]
    acc = jnp.dot(w_ref[...], rhs_ref[...], preferred_element_type=jnp.float32)
    o_ref[0] = acc.astype(o_ref.dtype)


def conv_transpose2d_pallas(x, weight, stride=1, padding=0, output_padding=0,
                            dilation=1, *, tile_m=1024, compute_dtype=None,
                            out_dtype=None, vmem_limit_bytes=None):
    """F.conv_transpose2d(x, weight, bias=None, stride, padding, output_padding,
    groups=1, dilation) — forward only (polyphase, no zero-upsampling)."""
    s0, s1 = _pair(stride)
    p0, p1 = _pair(padding)
    op0, op1 = _pair(output_padding)
    d0, d1 = _pair(dilation)

    N, Cin, H, W = x.shape
    Cin_w, Cout, Kh, Kw = weight.shape     # transposed-conv weight: (Cin, Cout, Kh, Kw)
    assert Cin == Cin_w

    Ho = (H - 1) * s0 - 2 * p0 + d0 * (Kh - 1) + op0 + 1
    Wo = (W - 1) * s1 - 2 * p1 + d1 * (Kw - 1) + op1 + 1
    assert Ho > 0 and Wo > 0

    ah = _axis_plan(H, Ho, Kh, s0, p0, d0)
    aw = _axis_plan(W, Wo, Kw, s1, p1, d1)

    PH = s0 * s1
    nA, nB = len(ah['a_vals']), len(aw['a_vals'])
    nT = nA * nB                                   # tap slots (<= ceil(K/s) per axis)
    Hrows, Wcols = ah['ext'], aw['ext']            # padded un-upsampled grid
    NRmax, NCmax = ah['n_max'], aw['n_max']
    M_wide = NRmax * Wcols                         # wide (un-cropped) output length
    max_off = ah['a_vals'][-1] * Wcols + aw['a_vals'][-1]

    cdt = jnp.dtype(compute_dtype) if compute_dtype is not None else jnp.dtype(x.dtype)
    odt = jnp.dtype(out_dtype) if out_dtype is not None else jnp.dtype(x.dtype)

    halo = _round_up(max(max_off, 1), 128)         # halo tail fetched by manual DMA
    tm = _round_up(max(int(tile_m), 128), 128)
    tm = min(tm, _round_up(M_wide, 128))
    tm = max(tm, halo)
    if tm <= max_off:                              # keep every tap's main piece non-empty
        tm += 128
    MT = pl.cdiv(M_wide, tm)
    L_need = MT * tm + halo                        # last tile's halo DMA stays in bounds

    # ---- one-pass glue: cast first, place x into one zeroed 2-D grid, reshape ----
    rows_alloc = pl.cdiv(L_need, Wcols)
    assert rows_alloc >= ah['dst0'] + ah['ncpy']
    buf = jnp.zeros((N, Cin, rows_alloc, Wcols), cdt)
    xs = x[:, :, ah['src0']:ah['src0'] + ah['ncpy'],
           aw['src0']:aw['src0'] + aw['ncpy']].astype(cdt)
    buf = buf.at[:, :, ah['dst0']:ah['dst0'] + ah['ncpy'],
                 aw['dst0']:aw['dst0'] + aw['ncpy']].set(xs)
    x_flat = buf.reshape(N, Cin, rows_alloc * Wcols)

    # ---- phase-folded packed weight: (PH*Cout, nT*Cin), constant block -> resident ----
    # Contraction K dim kept exact (no 128/256 zero-pad): padding would require
    # zeroing the rhs scratch rows every step (garbage * 0 can still be NaN).
    Crows = PH * Cout
    Crows_pad = _round_up(Crows, 8)
    wt = weight.astype(cdt)
    Wb = jnp.zeros((Crows_pad, nT * Cin), cdt)
    for kh in range(Kh):
        for kw in range(Kw):
            ph = ah['r_of'][kh] * s1 + aw['r_of'][kw]
            t = ah['slot'][kh] * nB + aw['slot'][kw]
            Wb = Wb.at[ph * Cout:(ph + 1) * Cout,
                       t * Cin:(t + 1) * Cin].set(wt[:, :, kh, kw].T)

    offs = tuple(a * Wcols + b for a in ah['a_vals'] for b in aw['a_vals'])
    need_halo = any(o > 0 for o in offs)

    kernel = functools.partial(_convt_kernel, offs=offs, tm=tm, halo=halo,
                               cin=Cin, need_halo=need_halo)

    cost = pl.CostEstimate(
        flops=2 * N * MT * tm * Crows_pad * nT * Cin,
        transcendentals=0,
        bytes_accessed=int(N * Cin * rows_alloc * Wcols * cdt.itemsize
                           + Crows_pad * nT * Cin * cdt.itemsize
                           + N * Cin * MT * halo * cdt.itemsize
                           + N * Crows_pad * MT * tm * odt.itemsize))

    out_wide = pl.pallas_call(
        kernel,
        out_shape=jax.ShapeDtypeStruct((N, Crows_pad, MT * tm), odt),
        grid_spec=pltpu.PrefetchScalarGridSpec(
            num_scalar_prefetch=0,
            grid=(N, MT),
            in_specs=[
                pl.BlockSpec((1, Cin, tm), lambda n, m: (n, 0, m)),   # streamed block
                pl.BlockSpec(memory_space=pl.ANY),                    # halo source (HBM)
                pl.BlockSpec((Crows_pad, nT * Cin), lambda n, m: (0, 0)),  # weight
            ],
            out_specs=pl.BlockSpec((1, Crows_pad, tm), lambda n, m: (n, 0, m)),
            scratch_shapes=[
                pltpu.VMEM((Cin, halo), cdt),      # halo tail buffer
                pltpu.SemaphoreType.DMA,           # its DMA semaphore
                pltpu.VMEM((nT * Cin, tm), cdt),   # im2col rhs operand
            ]),
        compiler_params=pltpu.CompilerParams(
            dimension_semantics=("parallel", "parallel"),
            vmem_limit_bytes=vmem_limit_bytes),
        cost_estimate=cost,
    )(x_flat, x_flat, Wb)

    # ---- de-interleave phases + crop back to (N, Cout, Ho, Wo) ----
    phase = out_wide[:, :Crows, :M_wide].reshape(N, PH, Cout, NRmax, Wcols)
    if PH == 1:
        out = phase[:, 0, :, :Ho, :Wo]
    else:
        out = jnp.zeros((N, Cout, Ho, Wo), odt)
        for r0 in range(s0):
            for r1 in range(s1):
                nr, nc = ah['n_out'][r0], aw['n_out'][r1]
                if nr == 0 or nc == 0:
                    continue
                pph = r0 * s1 + r1
                out = out.at[:, :, ah['o0'][r0]::s0, aw['o0'][r1]::s1].set(
                    phase[:, pph, :, :nr, :nc])
    return out


class AsymmetricFeedbackConvTranspose2dPallas:
    """Forward pass of AsymmetricFeedbackConvTranspose2d (algorithm='FA').

    `weight_feedback` only participates in the custom backward hook (feedback
    alignment), so the forward output is identical to nn.ConvTranspose2d with
    the same `weight`.
    """

    def __init__(self, in_channels, out_channels, kernel_size, stride=1,
                 padding=0, output_padding=0, groups=1, bias=False, dilation=1,
                 compute_dtype=None, out_dtype=None, key=jax.random.PRNGKey(0)):
        assert groups == 1 and not bias  # TODO(synk): groups>1 / bias unsupported
        self.in_channels = in_channels
        self.out_channels = out_channels
        self.kernel_size = _pair(kernel_size)
        self.stride = _pair(stride)
        self.padding = _pair(padding)
        self.output_padding = _pair(output_padding)
        self.dilation = _pair(dilation)
        self.compute_dtype = compute_dtype
        self.out_dtype = out_dtype

        kh, kw = self.kernel_size
        wshape = (in_channels, out_channels, kh, kw)
        # kaiming_uniform_(a=sqrt(5)) -> U(-1/sqrt(fan_in), 1/sqrt(fan_in)),
        # fan_in = out_channels * kh * kw for a transposed-conv weight.
        fan_in = out_channels * kh * kw
        bound = 1.0 / math.sqrt(fan_in)
        k_w, k_fb = jax.random.split(key)
        self.weight = jax.random.uniform(
            k_w, wshape, jnp.float32, minval=-bound, maxval=bound)
        # Random feedback weight (kaiming fan_out / relu); unused in forward.
        fan_out = in_channels * kh * kw
        fb_bound = math.sqrt(6.0 / fan_out)
        self.weight_feedback = jax.random.uniform(
            k_fb, wshape, jnp.float32, minval=-fb_bound, maxval=fb_bound)

    def __call__(self, x):
        return conv_transpose2d_pallas(
            x, self.weight, stride=self.stride, padding=self.padding,
            output_padding=self.output_padding, dilation=self.dilation,
            compute_dtype=self.compute_dtype, out_dtype=self.out_dtype)


def _reference_convt(x, weight, stride, padding, output_padding, dilation):
    s = _pair(stride); p = _pair(padding); op = _pair(output_padding); d = _pair(dilation)
    Kh, Kw = weight.shape[2], weight.shape[3]
    w_oihw = jnp.flip(weight, (2, 3)).transpose(1, 0, 2, 3)   # (Cout, Cin, Kh, Kw)
    pad_h = (d[0] * (Kh - 1) - p[0], d[0] * (Kh - 1) - p[0] + op[0])
    pad_w = (d[1] * (Kw - 1) - p[1], d[1] * (Kw - 1) - p[1] + op[1])
    return jax.lax.conv_general_dilated(
        x, w_oihw, window_strides=(1, 1), padding=(pad_h, pad_w),
        lhs_dilation=s, rhs_dilation=d,
        dimension_numbers=("NCHW", "OIHW", "NCHW"))


if __name__ == "__main__":
    key = jax.random.PRNGKey(0)
    k_x, k_m, k_w1 = jax.random.split(key, 3)

    N, Cin, H, W = 2, 4, 16, 16
    Cout, K, stride, padding, output_padding, dilation = 8, 3, 2, 1, 1, 1

    x = jax.random.normal(k_x, (N, Cin, H, W), jnp.float32)
    mod = AsymmetricFeedbackConvTranspose2dPallas(
        Cin, Cout, K, stride=stride, padding=padding,
        output_padding=output_padding, dilation=dilation, key=k_m)

    # --- stride=2 polyphase path, f32 ---
    out = jax.block_until_ready(mod(x))
    assert out.shape == (N, Cout, 32, 32), out.shape
    ref = _reference_convt(x, mod.weight, stride, padding, output_padding, dilation)
    err = float(jnp.max(jnp.abs(out - ref)))
    assert jnp.allclose(out, ref, rtol=1e-3, atol=1e-3), err

    # --- stride=1 path (PH == 1), f32 ---
    w1 = jax.random.uniform(k_w1, (Cin, Cout, 3, 3), jnp.float32,
                            minval=-0.12, maxval=0.12)
    out1 = jax.block_until_ready(
        conv_transpose2d_pallas(x, w1, stride=1, padding=1))
    assert out1.shape == (N, Cout, 16, 16), out1.shape
    ref1 = _reference_convt(x, w1, 1, 1, 0, 1)
    err1 = float(jnp.max(jnp.abs(out1 - ref1)))
    assert jnp.allclose(out1, ref1, rtol=1e-3, atol=1e-3), err1

    # --- bf16 compute + bf16 output (halves HBM/DMA bytes), f32 accumulation ---
    out_bf16 = jax.block_until_ready(conv_transpose2d_pallas(
        x, mod.weight, stride=stride, padding=padding,
        output_padding=output_padding, dilation=dilation,
        compute_dtype=jnp.bfloat16, out_dtype=jnp.bfloat16))
    err_bf16 = float(jnp.max(jnp.abs(out_bf16.astype(jnp.float32) - ref)))
    assert jnp.allclose(out_bf16.astype(jnp.float32), ref, rtol=5e-2, atol=5e-2), err_bf16

    print("KERNEL_OK")
</pallas_src>

<mosaic_0001>
module attributes {stable_mosaic.version = 11 : i64} {
  func.func @_convt_kernel(%arg0: i32, %arg1: i32, %arg2: memref<1x4x384xf32, #tpu.memory_space<vmem>>, %arg3: memref<2x4x527xf32, #tpu.memory_space<any>>, %arg4: memref<32x16xf32, #tpu.memory_space<vmem>>, %arg5: memref<1x32x384xf32, #tpu.memory_space<vmem>>, %arg6: memref<4x128xf32, #tpu.memory_space<vmem>>, %arg7: memref<!tpu.dma_semaphore, #tpu.memory_space<semaphore_mem>>, %arg8: memref<16x384xf32, #tpu.memory_space<vmem>>) attributes {dimension_semantics = [#tpu.dimension_semantics<parallel>, #tpu.dimension_semantics<parallel>], iteration_bounds = array<i64: 2, 1>, scalar_prefetch = 0 : i64, scratch_operands = 3 : i64, tpu.core_type = #tpu.core_type<tc>, window_params = [{transform_indices = @transform_0, window_bounds = array<i64: 1, 4, 384>}, {}, {pipeline_mode = #tpu.pipeline_mode<synchronous>, transform_indices = @transform_2, window_bounds = array<i64: 32, 16>}, {transform_indices = @transform_3, window_bounds = array<i64: 1, 32, 384>}]} {
    %c1_i32 = arith.constant 1 : i32
    %0 = arith.addi %arg1, %c1_i32 : i32
    %c384_i32 = arith.constant 384 : i32
    %1 = arith.muli %0, %c384_i32 : i32
    %2 = tpu.assume_multiple %1, 128 : i32
    %c0_i32 = arith.constant 0 : i32
    %3 = tpu.memref_slice %arg3[%arg0, %c0_i32, %2] : memref<2x4x527xf32, #tpu.memory_space<any>> -> memref<1x4x128xf32, #tpu.memory_space<any>>
    %4 = tpu.memref_squeeze %3 : memref<1x4x128xf32, #tpu.memory_space<any>> -> memref<4x128xf32, #tpu.memory_space<any>>
    tpu.enqueue_dma source(%4 : memref<4x128xf32, #tpu.memory_space<any>>) target(%arg6 : memref<4x128xf32, #tpu.memory_space<vmem>>) target_semaphore(%arg7 : memref<!tpu.dma_semaphore, #tpu.memory_space<semaphore_mem>>)
    %c0 = arith.constant 0 : index
    %c0_0 = arith.constant 0 : index
    %c0_1 = arith.constant 0 : index
    %5 = vector.load %arg2[%c0, %c0_0, %c0_1] : memref<1x4x384xf32, #tpu.memory_space<vmem>>, vector<1x4x384xf32>
    %6 = vector.shape_cast %5 : vector<1x4x384xf32> to vector<4x384xf32>
    %c0_2 = arith.constant 0 : index
    %c0_3 = arith.constant 0 : index
    %7 = vector.load %arg8[%c0_2, %c0_3] : memref<16x384xf32, #tpu.memory_space<vmem>>, vector<4x384xf32>
    tpu.vector_store %arg8[%c0_2, %c0_3], %6 {strides = array<i32>} : memref<16x384xf32, #tpu.memory_space<vmem>>, vector<4x384xf32>,
    %c0_4 = arith.constant 0 : index
    %c0_5 = arith.constant 0 : index
    %c1 = arith.constant 1 : index
    %8 = vector.load %arg2[%c0_4, %c0_5, %c1] : memref<1x4x384xf32, #tpu.memory_space<vmem>>, vector<1x4x383xf32>
    %9 = vector.shape_cast %8 : vector<1x4x383xf32> to vector<4x383xf32>
    %c4 = arith.constant 4 : index
    %c0_6 = arith.constant 0 : index
    %10 = vector.load %arg8[%c4, %c0_6] : memref<16x384xf32, #tpu.memory_space<vmem>>, vector<4x383xf32>
    tpu.vector_store %arg8[%c4, %c0_6], %9 {strides = array<i32>} : memref<16x384xf32, #tpu.memory_space<vmem>>, vector<4x383xf32>,
    %c0_7 = arith.constant 0 : index
    %c0_8 = arith.constant 0 : index
    %c17 = arith.constant 17 : index
    %11 = vector.load %arg2[%c0_7, %c0_8, %c17] : memref<1x4x384xf32, #tpu.memory_space<vmem>>, vector<1x4x367xf32>
    %12 = vector.shape_cast %11 : vector<1x4x367xf32> to vector<4x367xf32>
    %c8 = arith.constant 8 : index
    %c0_9 = arith.constant 0 : index
    %13 = vector.load %arg8[%c8, %c0_9] : memref<16x384xf32, #tpu.memory_space<vmem>>, vector<4x367xf32>
    tpu.vector_store %arg8[%c8, %c0_9], %12 {strides = array<i32>} : memref<16x384xf32, #tpu.memory_space<vmem>>, vector<4x367xf32>,
    %c0_10 = arith.constant 0 : index
    %c0_11 = arith.constant 0 : index
    %c18 = arith.constant 18 : index
    %14 = vector.load %arg2[%c0_10, %c0_11, %c18] : memref<1x4x384xf32, #tpu.memory_space<vmem>>, vector<1x4x366xf32>
    %15 = vector.shape_cast %14 : vector<1x4x366xf32> to vector<4x366xf32>
    %c12 = arith.constant 12 : index
    %c0_12 = arith.constant 0 : index
    %16 = vector.load %arg8[%c12, %c0_12] : memref<16x384xf32, #tpu.memory_space<vmem>>, vector<4x366xf32>
    tpu.vector_store %arg8[%c12, %c0_12], %15 {strides = array<i32>} : memref<16x384xf32, #tpu.memory_space<vmem>>, vector<4x366xf32>,
    %c0_i32_13 = arith.constant 0 : i32
    %17 = tpu.memref_slice %arg3[%arg0, %c0_i32_13, %2] : memref<2x4x527xf32, #tpu.memory_space<any>> -> memref<1x4x128xf32, #tpu.memory_space<any>>
    %18 = tpu.memref_squeeze %17 : memref<1x4x128xf32, #tpu.memory_space<any>> -> memref<4x128xf32, #tpu.memory_space<any>>
    tpu.wait_dma2 semaphore(%arg7 : memref<!tpu.dma_semaphore, #tpu.memory_space<semaphore_mem>>) src(%18 : memref<4x128xf32, #tpu.memory_space<any>>) dst(%arg6 : memref<4x128xf32, #tpu.memory_space<vmem>>)
    %c0_14 = arith.constant 0 : index
    %c0_15 = arith.constant 0 : index
    %19 = vector.load %arg6[%c0_14, %c0_15] : memref<4x128xf32, #tpu.memory_space<vmem>>, vector<4x1xf32>
    %c4_16 = arith.constant 4 : index
    %c383 = arith.constant 383 : index
    %20 = vector.load %arg8[%c4_16, %c383] : memref<16x384xf32, #tpu.memory_space<vmem>>, vector<4x1xf32>
    tpu.vector_store %arg8[%c4_16, %c383], %19 {strides = array<i32>} : memref<16x384xf32, #tpu.memory_space<vmem>>, vector<4x1xf32>,
    %c0_17 = arith.constant 0 : index
    %c0_18 = arith.constant 0 : index
    %21 = vector.load %arg6[%c0_17, %c0_18] : memref<4x128xf32, #tpu.memory_space<vmem>>, vector<4x17xf32>
    %c8_19 = arith.constant 8 : index
    %c367 = arith.constant 367 : index
    %22 = vector.load %arg8[%c8_19, %c367] : memref<16x384xf32, #tpu.memory_space<vmem>>, vector<4x17xf32>
    tpu.vector_store %arg8[%c8_19, %c367], %21 {strides = array<i32>} : memref<16x384xf32, #tpu.memory_space<vmem>>, vector<4x17xf32>,
    %c0_20 = arith.constant 0 : index
    %c0_21 = arith.constant 0 : index
    %23 = vector.load %arg6[%c0_20, %c0_21] : memref<4x128xf32, #tpu.memory_space<vmem>>, vector<4x18xf32>
    %c12_22 = arith.constant 12 : index
    %c366 = arith.constant 366 : index
    %24 = vector.load %arg8[%c12_22, %c366] : memref<16x384xf32, #tpu.memory_space<vmem>>, vector<4x18xf32>
    tpu.vector_store %arg8[%c12_22, %c366], %23 {strides = array<i32>} : memref<16x384xf32, #tpu.memory_space<vmem>>, vector<4x18xf32>,
    %c0_23 = arith.constant 0 : index
    %c0_24 = arith.constant 0 : index
    %25 = vector.load %arg4[%c0_23, %c0_24] : memref<32x16xf32, #tpu.memory_space<vmem>>, vector<32x16xf32>
    %c0_25 = arith.constant 0 : index
    %c0_26 = arith.constant 0 : index
    %26 = vector.load %arg8[%c0_25, %c0_26] : memref<16x384xf32, #tpu.memory_space<vmem>>, vector<16x384xf32>
    %cst = arith.constant dense<0.000000e+00> : vector<32x384xf32>
    %27 = tpu.matmul %25, %26, %cst {dimension_numbers = #tpu.dot_dimension_numbers<[1], [0], [0], [1], [0, 0, 1, 1], [], []>} : vector<32x16xf32>, vector<16x384xf32>, vector<32x384xf32> -> vector<32x384xf32>
    %c0_27 = arith.constant 0 : index
    %c0_28 = arith.constant 0 : index
    %c0_29 = arith.constant 0 : index
    %28 = vector.load %arg5[%c0_27, %c0_28, %c0_29] : memref<1x32x384xf32, #tpu.memory_space<vmem>>, vector<1x32x384xf32>
    %29 = vector.shape_cast %28 : vector<1x32x384xf32> to vector<32x384xf32>
    %30 = vector.shape_cast %27 : vector<32x384xf32> to vector<1x32x384xf32>
    tpu.vector_store %arg5[%c0_27, %c0_28, %c0_29], %30 {strides = array<i32>} : memref<1x32x384xf32, #tpu.memory_space<vmem>>, vector<1x32x384xf32>,
    return
  }
  func.func @transform_0(%arg0: i32, %arg1: i32) -> (i32, i32, i32) {
    %c0_i32 = arith.constant 0 : i32
    %c0_i32_0 = arith.constant 0 : i32
    return %arg0, %c0_i32, %arg1 : i32, i32, i32
  }
  func.func @transform_2(%arg0: i32, %arg1: i32) -> (i32, i32) {
    %c0_i32 = arith.constant 0 : i32
    %c0_i32_0 = arith.constant 0 : i32
    %c0_i32_1 = arith.constant 0 : i32
    return %c0_i32, %c0_i32_0 : i32, i32
  }
  func.func @transform_3(%arg0: i32, %arg1: i32) -> (i32, i32, i32) {
    %c0_i32 = arith.constant 0 : i32
    %c0_i32_0 = arith.constant 0 : i32
    return %arg0, %c0_i32, %arg1 : i32, i32, i32
  }
}

</mosaic_0001>

<llo_original>
// kernel: tpu_custom_call.1
$region0: #{tpu_custom_call.1}
  #allocation0 [shape = 'u32[]', space=smem, size = 0x4, offset = 0x4, fixed_abs, tag = 'smem constant byte address 0x4 - core index']
  #allocation1 [shape = 'u32[144,128]{1,0:T(1,128)}', space=vmem, size = 0x12000, scoped, tag = 'internal scratch']
  #allocation2 [shape = 'f32[4,128]{1,0:T(4,128)}', space=vmem, size = 0x800, scoped, tag = 'scratch operand']
  #allocation3 [shape = 's32[1]{0}', space=sflag, size = 0x4, scoped, tag = 'scratch operand']
  #allocation4 [shape = 'f32[16,384]{1,0:T(8,128)}', space=vmem, size = 0x6000, scoped, tag = 'scratch operand']
  #allocation7 [shape = 's32[]', space=sflag, size = 0x4, offset = 0, fixed_abs, tag = 'sflag constant byte address 0x0 - dummy sync flag']
  #allocation8 [shape = 's32[]', space=sflag, size = 0x4, offset = 0, fixed_abs, tag = 'sflag constant byte address 0x0 - dummy sync flag']
  #allocation9 [shape = 'u32[]', space=smem, size = 0x4, offset = 0x44, fixed_abs, tag = 'smem constant byte address 0x44 - assertion arg 0']
  #allocation10 [shape = 'u32[]', space=smem, size = 0x4, offset = 0x48, fixed_abs, tag = 'smem constant byte address 0x48 - assertion arg 1']
  %s0 = inlined_call_operand.vmem [shape: f32[2,4,527], index: 0, kind: input, shape index: {}]
  %s1 = inlined_call_operand.hbm [shape: f32[2,4,527], index: 1, kind: input, shape index: {}]
  %s2 = inlined_call_operand.vmem [shape: f32[32,16], index: 2, kind: input, shape index: {}]
  %s3 = inlined_call_operand.hbm [shape: f32[2,32,384], index: 3, kind: output, shape index: {}]
  %s4 = sld [smem:[#allocation0]]
  $region45: #{tpu_custom_call.1} parent=0
    _
  %s6 = ssub.s32 1, %s4
  %s7 = scalar_select 0, %s6, %s4
  $region1: #{tpu_custom_call.1} parent=0
    #allocation5 [shape = 'u8[98304]{0}', space=vmem, size = 0x18000, scoped, tag = 'output window, operand 0']
    #allocation6 [shape = 's32[2]{0}', space=sflag, size = 0x8, scoped, tag = 'scoped memory for tpu_custom_call.1']
    %8 = vsyncpa [#allocation6], 0
    %s9 = scalar_lea.sflag [#allocation6], 1
    %10 = vsyncpa %s9, 0
    loop: start=0, step=1, limit=4
    $region2: #{tpu_custom_call.1} parent=1 // loop_pre_header
      _
    $region3: #{tpu_custom_call.1} parent=1 // loop_header
      %s12 = sphi 0, %s16
      %p13 = scmp.ge.s32.totalorder %s12, 4
      %s19 = sphi 0, %s31
      %s20 = sphi 0, %s27
      %s21 = sphi 0, %s19
      %s22 = sphi 0, %s20
      %s23 = sphi 0, %s21
      %s24 = sphi 0, %s22
      %s36 = sphi 0, %s38
      %s39 = sphi 0, %s36
      %s40 = sphi 0, %s39
      %s56 = sphi 0, %s40
      %s60 = sphi 0, %s60
      %s62 = sphi 0, %s60
      %s63 = sphi 0, %s62
      %s77 = sphi 0, %s63
      %s85 = sphi 0, %s87
      %s88 = sphi 0, %s85
      %s89 = sphi 0, %s88
      %s105 = sphi 0, %s89
    $region4: #{tpu_custom_call.1} parent=1 // loop_header_branch
      %15 = sbr.rel (%p13) target = $region8
    $region5: #{tpu_custom_call.1} parent=1 // loop_body
      %s17 = ssub.s32 %s12, 1
      %s18 = ssub.s32 %s12, 2
      %s25 = sadd.s32 1, %s20
      %p26 = scmp.ge.s32.totalorder %s25, 1
      %s27 = scalar_select %p26, 0, %s25
      %s28 = sadd.s32 1, %s19
      %s29 = scalar_select %p26, %s28, %s19
      %p30 = scmp.ge.s32.totalorder %s29, 2
      %s31 = scalar_select %p30, 0, %s29
      %s32 = ssub.s32 %s19, %s31
      %s33 = ssub.s32 %s20, %s27
      %s34 = sor.u32 %s32, %s33
      %p35 = scmp.eq.s32.totalorder %s34, 0
      %s37 = sadd.s32 %s36, 1
      %s38 = scalar_select %p35, %s36, %s37
      %p41 = pneg %p35
      %p42 = scmp.eq.s32.totalorder %s12, 1
      %p43 = por %p41, %p42
      %p44 = scmp.ne.s32.totalorder %s36, %s39
      %p45 = scmp.eq.s32.totalorder %s12, 0
      %p46 = por %p44, %p45
      %p47 = scmp.ne.s32.totalorder %s36, %s39
      %p48 = scmp.eq.s32.totalorder %s17, 1
      %p49 = por %p47, %p48
      %p50 = scmp.ne.s32.totalorder %s39, %s40
      %p51 = scmp.eq.s32.totalorder %s17, 0
      %p52 = por %p50, %p51
      %p53 = scmp.ne.s32.totalorder %s39, %s40
      %p54 = scmp.eq.s32.totalorder %s18, 1
      %p55 = por %p53, %p54
      %p57 = scmp.ne.s32.totalorder %s40, %s56
      %p58 = scmp.eq.s32.totalorder %s18, 0
      %p59 = por %p57, %p58
      %s61 = sadd.s32 %s60, 1
      %p64 = scmp.eq.s32.totalorder %s12, 1
      %p65 = scmp.ne.s32.totalorder %s60, %s62
      %p66 = scmp.eq.s32.totalorder %s12, 0
      %p67 = por %p65, %p66
      %p68 = scmp.ne.s32.totalorder %s60, %s62
      %p69 = scmp.eq.s32.totalorder %s17, 1
      %p70 = por %p68, %p69
      %p71 = scmp.ne.s32.totalorder %s62, %s63
      %p72 = scmp.eq.s32.totalorder %s17, 0
      %p73 = por %p71, %p72
      %p74 = scmp.ne.s32.totalorder %s62, %s63
      %p75 = scmp.eq.s32.totalorder %s18, 1
      %p76 = por %p74, %p75
      %p78 = scmp.ne.s32.totalorder %s63, %s77
      %p79 = scmp.eq.s32.totalorder %s18, 0
      %p80 = por %p78, %p79
      %s81 = ssub.s32 %s19, %s31
      %s82 = ssub.s32 %s20, %s27
      %s83 = sor.u32 %s81, %s82
      %p84 = scmp.eq.s32.totalorder %s83, 0
      %s86 = sadd.s32 %s85, 1
      %s87 = scalar_select %p84, %s85, %s86
      %p90 = pneg %p84
      %p91 = scmp.eq.s32.totalorder %s12, 1
      %p92 = por %p90, %p91
      %p93 = scmp.ne.s32.totalorder %s85, %s88
      %p94 = scmp.eq.s32.totalorder %s12, 0
      %p95 = por %p93, %p94
      %p96 = scmp.ne.s32.totalorder %s85, %s88
      %p97 = scmp.eq.s32.totalorder %s17, 1
      %p98 = por %p96, %p97
      %p99 = scmp.ne.s32.totalorder %s88, %s89
      %p100 = scmp.eq.s32.totalorder %s17, 0
      %p101 = por %p99, %p100
      %p102 = scmp.ne.s32.totalorder %s88, %s89
      %p103 = scmp.eq.s32.totalorder %s18, 1
      %p104 = por %p102, %p103
      %p106 = scmp.ne.s32.totalorder %s89, %s105
      %p107 = scmp.eq.s32.totalorder %s18, 0
      %p108 = por %p106, %p107
      %p109 = scmp.le.s32.totalorder 1, %s12
      %p110 = scmp.lt.s32.totalorder %s12, 3
      %p111 = pnand %p109, %p110
      %p112 = pneg %p111
      // Predicated region
      $region9: #{tpu_custom_call.1} parent=5 // pred_check
        _
      $region10: #{tpu_custom_call.1} parent=5 // pred_check_branch
        %114 = sbr.rel (%p111) target = $region12
      $region11: #{tpu_custom_call.1} parent=5 // pred_region
        %s115 = ssub.s32 %s12, 1
        // Predicated region
        $region13: #{tpu_custom_call.1} parent=11 // pred_check
          %p116 = pneg %p73
        $region14: #{tpu_custom_call.1} parent=11 // pred_check_branch
          %118 = sbr.rel (%p116) target = $region16
        $region15: #{tpu_custom_call.1} parent=11 // pred_region
          _
        $region16: #{tpu_custom_call.1} parent=11 // pred_fallthru
          _
      $region12: #{tpu_custom_call.1} parent=5 // pred_fallthru
        _
      %p119 = scmp.lt.s32.totalorder %s12, 2
      // Predicated region
      $region17: #{tpu_custom_call.1} parent=5 // pred_check
        %p120 = pneg %p119
      $region18: #{tpu_custom_call.1} parent=5 // pred_check_branch
        %122 = sbr.rel (%p120) target = $region20
      $region19: #{tpu_custom_call.1} parent=5 // pred_region
        // Predicated region
        $region21: #{tpu_custom_call.1} parent=19 // pred_check
          %p123 = pneg %p46
        $region22: #{tpu_custom_call.1} parent=19 // pred_check_branch
          %125 = sbr.rel (%p123) target = $region24
        $region23: #{tpu_custom_call.1} parent=19 // pred_region
          %s126 = smul.u32 3, %s20
          %s127 = ssub.s32 5, %s126
          %p128 = scmp.lt.s32.totalorder %s127, 3
          %s129 = scalar_select %p128, %s127, 3
          %s130 = smul.u32 64, %s129
          %p131 = scmp.lt.s32.totalorder %s19, 1
          %s132 = scalar_select %p131, %s19, 1
          %p133 = scmp.lt.s32.totalorder %s126, 4
          %s134 = scalar_select %p133, %s126, 4
          %s135 = smul.addr %s132, 5
          %s136 = sadd.s32 %s134, %s135
          %s137 = smul.addr %s136, 4
          %s138 = scalar_lea.vmem %s0, %s137
          %s139 = smul.u32 3, %s20
          %s140 = ssub.s32 5, %s139
          %p141 = scmp.lt.s32.totalorder %s140, 3
          %s142 = scalar_select %p141, %s140, 3
          %s143 = smul.u32 64, %s142
        $region24: #{tpu_custom_call.1} parent=19 // pred_fallthru
          _
      $region20: #{tpu_custom_call.1} parent=5 // pred_fallthru
        _
      %p144 = scmp.le.s32.totalorder 1, %s12
      %p145 = scmp.lt.s32.totalorder %s12, 3
      %p146 = pnand %p144, %p145
      %p147 = pneg %p146
      // Predicated region
      $region25: #{tpu_custom_call.1} parent=5 // pred_check
        _
      $region26: #{tpu_custom_call.1} parent=5 // pred_check_branch
        %149 = sbr.rel (%p146) target = $region28
      $region27: #{tpu_custom_call.1} parent=5 // pred_region
        %s150 = ssub.s32 %s12, 1
        %s151 = smul.u32 3, %s22
        %s152 = ssub.s32 5, %s151
        %p153 = scmp.lt.s32.totalorder %s152, 3
        %s154 = scalar_select %p153, %s152, 3
        %s155 = smul.u32 64, %s154
        %p156 = scmp.lt.s32.totalorder %s21, 1
        %s157 = scalar_select %p156, %s21, 1
        %p158 = scmp.lt.s32.totalorder %s151, 4
        %s159 = scalar_select %p158, %s151, 4
        %s160 = smul.addr %s157, 5
        %s161 = sadd.s32 %s159, %s160
        %s162 = smul.addr %s161, 4
        %s163 = scalar_lea.vmem %s0, %s162
        %p164 = pneg %p52
        %p165 = pneg %p49
        %p166 = pneg %p73
        %p167 = pneg %p70
        %p168 = pneg %p101
        %p169 = pneg %p98
        %s170 = sand.u32 %s88, 1
        %s171 = scalar_lea.sflag [#allocation6], %s170
        %s172 = sand.u32 %s88, 1
        %s173 = smul.addr %s172, 96
        %s174 = scalar_lea.vmem [#allocation5], %s173
        %s175 = smul.u32 3, %s22
        %s176 = ssub.s32 5, %s175
        %p177 = scmp.lt.s32.totalorder %s176, 3
        %s178 = scalar_select %p177, %s176, 3
        %s179 = smul.u32 64, %s178
        %p180 = scmp.lt.s32.totalorder %s21, 1
        %s181 = scalar_select %p180, %s21, 1
        %p182 = scmp.lt.s32.totalorder %s175, 4
        %s183 = scalar_select %p182, %s175, 4
        %s184 = smul.addr %s181, 5
        %s185 = sadd.s32 %s183, %s184
        %s186 = smul.addr %s185, 4
        %s187 = scalar_lea.vmem %s0, %s186
        %s188 = smul.u32 3, %s22
        %s189 = ssub.s32 5, %s188
        %p190 = scmp.lt.s32.totalorder %s189, 3
        %s191 = scalar_select %p190, %s189, 3
        %s192 = smul.u32 64, %s191
        %s193 = smul.u32 3, %s22
        %s194 = sadd.s32 %s22, 1
        %s195 = smul.u32 %s194, 384
        %s196 = sshra.s32 %s195, 7
        %s197 = sand.u32 %s195, 127
        %s198 = smul.u32 %s21, 5
        %s199 = sadd.s32 %s196, %s198
        %s200 = smul.addr %s199, 64
        %s201 = scalar_lea.hbm %s1, %s200
        // Predicated region
        $region29: #{tpu_custom_call.1} parent=27 // pred_check
          _
        $region30: #{tpu_custom_call.1} parent=27 // pred_check_branch
          %203 = sbr.rel target = $region32
        $region31: #{tpu_custom_call.1} parent=27 // pred_region
          %204 = sst [smem:[#allocation9]] [#allocation8]
          %205 = sst [smem:[#allocation10]] [#allocation7]
        $region32: #{tpu_custom_call.1} parent=27 // pred_fallthru
          _
        %207 = shalt.err (0)
        %s209 = sshll.u32 [#allocation2], 4
        %s210 = int_to_ptr.vmem [resolvable:$true] %s209
        %212 = dma.hbm_to_vmem [thread:$0]  %s201, 64, %s210, [#allocation3]
        %v213 = vld [vmem:[%s187] sm:$0xff]
        %v214 = vld [vmem:[%s187 + $0x8] sm:$0xf]
        %v216 = vcombine.high %v213, %v213
        %218 = vst [vmem:[#allocation4] sm:$0xf] %v213
        %219 = vst [vmem:[#allocation4 + $0x8] sm:$0xf] %v216
        %220 = vst [vmem:[#allocation4 + $0x10] sm:$0xf] %v214
        %v221 = vld [vmem:[%s187] sm:$0xff]
        %v222 = vld [vmem:[%s187 + $0x8] sm:$0xf]
        %v225 = vcombine.low %v221, %v221
        %v226 = vcombine.low %v222, %v222
        %227 = vrot.lane.b32.xlu0 %v225, 127
        %v228 = vpop.permute.xlu0 %227
        %229 = vrot.lane.b32.xlu0 %v221, 127
        %v230 = vpop.permute.xlu0 %229
        %231 = vrot.lane.b32.xlu0 %v226, 127
        %v232 = vpop.permute.xlu0 %231
        %vm233 = vcmask 1039360
        %v234 = vsel %vm233, %v228, %v230
        %v235 = vsel %vm233, %v230, %v232
        %239 = vst [vmem:[#allocation4] sm:$0xf0] %v234
        %240 = vst [vmem:[#allocation4 + $0x8] sm:$0xf0] %v235
        %vm241 = vcmask 1039364
        %242 = vst.msk [vmem:[#allocation4 + $0x10] sm:$0xf0] %vm241, %v232
        %v243 = vld [vmem:[%s187] sm:$0xff]
        %v244 = vld [vmem:[%s187 + $0x8] sm:$0xf]
        %v247 = vcombine.high %v243, %v243
        %248 = vrot.lane.b32.xlu0 %v243, 111
        %v249 = vpop.permute.xlu0 %248
        %250 = vrot.lane.b32.xlu0 %v247, 111
        %v251 = vpop.permute.xlu0 %250
        %252 = vrot.lane.b32.xlu0 %v244, 111
        %v253 = vpop.permute.xlu0 %252
        %vm254 = vcmask 908288
        %v255 = vsel %vm254, %v249, %v251
        %v256 = vsel %vm254, %v251, %v253
        %260 = vst [vmem:[#allocation4 + $0x18] sm:$0xf] %v255
        %261 = vst [vmem:[#allocation4 + $0x20] sm:$0xf] %v256
        %vm262 = vcmask 904192
        %263 = vst.msk [vmem:[#allocation4 + $0x28] sm:$0xf] %vm262, %v253
        %v264 = vld [vmem:[%s187] sm:$0xff]
        %v265 = vld [vmem:[%s187 + $0x8] sm:$0xf]
        %v268 = vcombine.low %v264, %v264
        %v269 = vcombine.low %v265, %v265
        %270 = vrot.lane.b32.xlu0 %v268, 110
        %v271 = vpop.permute.xlu0 %270
        %272 = vrot.lane.b32.xlu0 %v264, 110
        %v273 = vpop.permute.xlu0 %272
        %274 = vrot.lane.b32.xlu0 %v269, 110
        %v275 = vpop.permute.xlu0 %274
        %vm276 = vcmask 900096
        %v277 = vsel %vm276, %v271, %v273
        %v278 = vsel %vm276, %v273, %v275
        %282 = vst [vmem:[#allocation4 + $0x18] sm:$0xf0] %v277
        %283 = vst [vmem:[#allocation4 + $0x20] sm:$0xf0] %v278
        %vm284 = vcmask 900100
        %285 = vst.msk [vmem:[#allocation4 + $0x28] sm:$0xf0] %vm284, %v275
        %s286 = smul.u32 4, 1
        %s287 = smul.u32 %s286, 1
        %s288 = sshll.u32 %s287, 4
        %289 = dma.done [#allocation3], %s288
        %v290 = vld [vmem:[#allocation2] sm:$0xf]
        %v292 = vrot.slane %v290, 4
        %293 = vrot.lane.b32.xlu0 %v292, 127
        %v294 = vpop.permute.xlu0 %293
        %vm296 = vcmask 1048572
        %297 = vst.msk [vmem:[#allocation4 + $0x10] sm:$0xf0] %vm296, %v294
        %v298 = vld [vmem:[#allocation2] sm:$0xf]
        %300 = vrot.lane.b32.xlu0 %v298, 111
        %v301 = vpop.permute.xlu0 %300
        %vm303 = vcmask 1044344
        %304 = vst.msk [vmem:[#allocation4 + $0x28] sm:$0xf] %vm303, %v301
        %v305 = vld [vmem:[#allocation2] sm:$0xf]
        %v307 = vrot.slane %v305, 4
        %308 = vrot.lane.b32.xlu0 %v307, 110
        %v309 = vpop.permute.xlu0 %308
        %vm311 = vcmask 1048436
        %312 = vst.msk [vmem:[#allocation4 + $0x28] sm:$0xf0] %vm311, %v309
        %v313 = vld [vmem:[%s2] sm:$0xff]
        %v314 = vld [vmem:[%s2 + $0x8] sm:$0xff]
        %v315 = vld [vmem:[%s2 + $0x10] sm:$0xff]
        %v316 = vld [vmem:[%s2 + $0x18] sm:$0xff]
        %v317 = vld [vmem:[#allocation4] sm:$0xff]
        %v318 = vld [vmem:[#allocation4 + $0x8] sm:$0xff]
        %v319 = vld [vmem:[#allocation4 + $0x10] sm:$0xff]
        %v320 = vld [vmem:[#allocation4 + $0x18] sm:$0xff]
        %v321 = vld [vmem:[#allocation4 + $0x20] sm:$0xff]
        %v322 = vld [vmem:[#allocation4 + $0x28] sm:$0xff]
        %vm323 = vcmask 130048
        %v325 = vsel %vm323, %v313, 0
        %v328 = vsel %vm323, %v314, 0
        %v331 = vsel %vm323, %v315, 0
        %v334 = vsel %vm323, %v316, 0
        %336 = vmatprep.subr.mxu0 0.0
        %337 = vmatpush1.msra.mxu0 0.0
        %338 = vmatprep.subr.mxu0 0.0
        %339 = vmatpush1.msra.mxu0 0.0
        %340 = vmatprep.subr.mxu0 0.0
        %341 = vmatpush1.msra.mxu0 0.0
        %342 = vmatprep.subr.mxu0 0.0
        %343 = vmatpush1.msra.mxu0 0.0
        %344 = vmatprep.subr.mxu0 0.0
        %345 = vmatpush1.msra.mxu0 0.0
        %346 = vmatprep.subr.mxu0 0.0
        %347 = vmatpush1.msra.mxu0 0.0
        %348 = vmatprep.subr.mxu0 0.0
        %349 = vmatpush1.msra.mxu0 0.0
        %350 = vmatprep.subr.mxu0 0.0
        %351 = vmatpush1.msra.mxu0 0.0
        %352 = vmatprep.subr.mxu0 0.0
        %353 = vmatpush1.msra.mxu0 0.0
        %354 = vmatprep.subr.mxu0 0.0
        %355 = vmatpush1.msra.mxu0 0.0
        %356 = vmatprep.subr.mxu0 0.0
        %357 = vmatpush1.msra.mxu0 0.0
        %358 = vmatprep.subr.mxu0 0.0
        %359 = vmatpush1.msra.mxu0 0.0
        %360 = vmatprep.subr.mxu0 0.0
        %361 = vmatpush1.msra.mxu0 0.0
        %362 = vmatprep.subr.mxu0 0.0
        %363 = vmatpush1.msra.mxu0 0.0
        %364 = vmatprep.subr.mxu0 %v321
        %365 = vmatpush1.msra.mxu0 %v320
        %366 = vmatprep.subr.mxu0 %v318
        %367 = vmatpush1.msra.mxu0 %v317
        %368 = vmatprep.subr.mxu0 0.0
        %369 = vmatpush2.msra.mxu0 0.0
        %370 = vmatprep.subr.mxu0 0.0
        %371 = vmatpush2.msra.mxu0 0.0
        %372 = vmatprep.subr.mxu0 0.0
        %373 = vmatpush2.msra.mxu0 0.0
        %374 = vmatprep.subr.mxu0 0.0
        %375 = vmatpush2.msra.mxu0 0.0
        %376 = vmatprep.subr.mxu0 0.0
        %377 = vmatpush2.msra.mxu0 0.0
        %378 = vmatprep.subr.mxu0 0.0
        %379 = vmatpush2.msra.mxu0 0.0
        %380 = vmatprep.subr.mxu0 0.0
        %381 = vmatpush2.msra.mxu0 0.0
        %382 = vmatprep.subr.mxu0 0.0
        %383 = vmatpush2.msra.mxu0 0.0
        %384 = vmatprep.subr.mxu0 0.0
        %385 = vmatpush2.msra.mxu0 0.0
        %386 = vmatprep.subr.mxu0 0.0
        %387 = vmatpush2.msra.mxu0 0.0
        %388 = vmatprep.subr.mxu0 0.0
        %389 = vmatpush2.msra.mxu0 0.0
        %390 = vmatprep.subr.mxu0 0.0
        %391 = vmatpush2.msra.mxu0 0.0
        %392 = vmatprep.subr.mxu0 0.0
        %393 = vmatpush2.msra.mxu0 0.0
        %394 = vmatprep.subr.mxu0 0.0
        %395 = vmatpush2.msra.mxu0 0.0
        %396 = vmatprep.subr.mxu0 0.0
        %397 = vmatpush2.msra.mxu0 0.0
        %398 = vmatprep.subr.mxu0 0.0
        %399 = vmatpush2.msra.mxu0 0.0
        %400 = vmatprep.mubr.f32.mxu0 0.0
        %401 = vmatmul.mubr.f32.gmra.mxu0 %v325
        %v402 = vpop.f32.mrf.mxu0
        %v403 = vadd.f32 0.0, %v402
        %v404 = vpop.f32.mrf.mxu0
        %v405 = vadd.f32 0.0, %v404
        %406 = vmatprep.mubr.f32.mxu0 0.0
        %407 = vmatmul.mubr.f32.gmra.mxu0 %v328
        %v408 = vpop.f32.mrf.mxu0
        %v409 = vadd.f32 0.0, %v408
        %v410 = vpop.f32.mrf.mxu0
        %v411 = vadd.f32 0.0, %v410
        %412 = vmatprep.mubr.f32.mxu0 0.0
        %413 = vmatmul.mubr.f32.gmra.mxu0 %v331
        %v414 = vpop.f32.mrf.mxu0
        %v415 = vadd.f32 0.0, %v414
        %v416 = vpop.f32.mrf.mxu0
        %v417 = vadd.f32 0.0, %v416
        %418 = vmatprep.mubr.f32.mxu0 0.0
        %419 = vmatmul.mubr.f32.gmra.mxu0 %v334
        %v420 = vpop.f32.mrf.mxu0
        %v421 = vadd.f32 0.0, %v420
        %v422 = vpop.f32.mrf.mxu0
        %v423 = vadd.f32 0.0, %v422
        %424 = vdwg.mxu0
        %425 = vmatprep.subr.mxu0 0.0
        %426 = vmatpush1.msra.mxu0 0.0
        %427 = vmatprep.subr.mxu0 0.0
        %428 = vmatpush1.msra.mxu0 0.0
        %429 = vmatprep.subr.mxu0 0.0
        %430 = vmatpush1.msra.mxu0 0.0
        %431 = vmatprep.subr.mxu0 0.0
        %432 = vmatpush1.msra.mxu0 0.0
        %433 = vmatprep.subr.mxu0 0.0
        %434 = vmatpush1.msra.mxu0 0.0
        %435 = vmatprep.subr.mxu0 0.0
        %436 = vmatpush1.msra.mxu0 0.0
        %437 = vmatprep.subr.mxu0 0.0
        %438 = vmatpush1.msra.mxu0 0.0
        %439 = vmatprep.subr.mxu0 0.0
        %440 = vmatpush1.msra.mxu0 0.0
        %441 = vmatprep.subr.mxu0 0.0
        %442 = vmatpush1.msra.mxu0 0.0
        %443 = vmatprep.subr.mxu0 0.0
        %444 = vmatpush1.msra.mxu0 0.0
        %445 = vmatprep.subr.mxu0 0.0
        %446 = vmatpush1.msra.mxu0 0.0
        %447 = vmatprep.subr.mxu0 0.0
        %448 = vmatpush1.msra.mxu0 0.0
        %449 = vmatprep.subr.mxu0 0.0
        %450 = vmatpush1.msra.mxu0 0.0
        %451 = vmatprep.subr.mxu0 0.0
        %452 = vmatpush1.msra.mxu0 0.0
        %453 = vmatprep.subr.mxu0 0.0
        %454 = vmatpush1.msra.mxu0 %v322
        %455 = vmatprep.subr.mxu0 0.0
        %456 = vmatpush1.msra.mxu0 %v319
        %457 = vmatprep.subr.mxu0 0.0
        %458 = vmatpush2.msra.mxu0 0.0
        %459 = vmatprep.subr.mxu0 0.0
        %460 = vmatpush2.msra.mxu0 0.0
        %461 = vmatprep.subr.mxu0 0.0
        %462 = vmatpush2.msra.mxu0 0.0
        %463 = vmatprep.subr.mxu0 0.0
        %464 = vmatpush2.msra.mxu0 0.0
        %465 = vmatprep.subr.mxu0 0.0
        %466 = vmatpush2.msra.mxu0 0.0
        %467 = vmatprep.subr.mxu0 0.0
        %468 = vmatpush2.msra.mxu0 0.0
        %469 = vmatprep.subr.mxu0 0.0
        %470 = vmatpush2.msra.mxu0 0.0
        %471 = vmatprep.subr.mxu0 0.0
        %472 = vmatpush2.msra.mxu0 0.0
        %473 = vmatprep.subr.mxu0 0.0
        %474 = vmatpush2.msra.mxu0 0.0
        %475 = vmatprep.subr.mxu0 0.0
        %476 = vmatpush2.msra.mxu0 0.0
        %477 = vmatprep.subr.mxu0 0.0
        %478 = vmatpush2.msra.mxu0 0.0
        %479 = vmatprep.subr.mxu0 0.0
        %480 = vmatpush2.msra.mxu0 0.0
        %481 = vmatprep.subr.mxu0 0.0
        %482 = vmatpush2.msra.mxu0 0.0
        %483 = vmatprep.subr.mxu0 0.0
        %484 = vmatpush2.msra.mxu0 0.0
        %485 = vmatprep.subr.mxu0 0.0
        %486 = vmatpush2.msra.mxu0 0.0
        %487 = vmatprep.subr.mxu0 0.0
        %488 = vmatpush2.msra.mxu0 0.0
        %489 = vmatprep.mubr.f32.mxu0 0.0
        %490 = vmatmul.mubr.f32.gmra.mxu0 %v325
        %v491 = vpop.f32.mrf.mxu0
        %v492 = vadd.f32 0.0, %v491
        %v493 = vpop.f32.mrf.mxu0
        %494 = vmatprep.mubr.f32.mxu0 0.0
        %495 = vmatmul.mubr.f32.gmra.mxu0 %v328
        %v496 = vpop.f32.mrf.mxu0
        %v497 = vadd.f32 0.0, %v496
        %v498 = vpop.f32.mrf.mxu0
        %499 = vmatprep.mubr.f32.mxu0 0.0
        %500 = vmatmul.mubr.f32.gmra.mxu0 %v331
        %v501 = vpop.f32.mrf.mxu0
        %v502 = vadd.f32 0.0, %v501
        %v503 = vpop.f32.mrf.mxu0
        %504 = vmatprep.mubr.f32.mxu0 0.0
        %505 = vmatmul.mubr.f32.gmra.mxu0 %v334
        %v506 = vpop.f32.mrf.mxu0
        %v507 = vadd.f32 0.0, %v506
        %v508 = vpop.f32.mrf.mxu0
        %509 = vdwg.mxu0
        %510 = vst [vmem:[%s174] sm:$0xff] %v403
        %511 = vst [vmem:[%s174 + $0x8] sm:$0xff] %v405
        %512 = vst [vmem:[%s174 + $0x10] sm:$0xff] %v492
        %513 = vst [vmem:[%s174 + $0x18] sm:$0xff] %v409
        %514 = vst [vmem:[%s174 + $0x20] sm:$0xff] %v411
        %515 = vst [vmem:[%s174 + $0x28] sm:$0xff] %v497
        %516 = vst [vmem:[%s174 + $0x30] sm:$0xff] %v415
        %517 = vst [vmem:[%s174 + $0x38] sm:$0xff] %v417
        %518 = vst [vmem:[%s174 + $0x40] sm:$0xff] %v502
        %519 = vst [vmem:[%s174 + $0x48] sm:$0xff] %v421
        %520 = vst [vmem:[%s174 + $0x50] sm:$0xff] %v423
        %521 = vst [vmem:[%s174 + $0x58] sm:$0xff] %v507
        %s522 = sand.u32 %s88, 1
        %s523 = scalar_lea.sflag [#allocation6], %s522
        %s524 = sand.u32 %s88, 1
        %s525 = smul.addr %s524, 96
        %s526 = scalar_lea.vmem [#allocation5], %s525
        // Predicated region
        $region33: #{tpu_custom_call.1} parent=27 // pred_check
          %p527 = pneg %p98
        $region34: #{tpu_custom_call.1} parent=27 // pred_check_branch
          %529 = sbr.rel (%p527) target = $region36
        $region35: #{tpu_custom_call.1} parent=27 // pred_region
          %s530 = smul.u32 3, %s22
          %s532 = ssub.s32 1536, 1536
          %533 = vsyncadd %s523, %s532
          %s534 = smul.addr %s21, 12
          %s535 = sadd.s32 %s530, %s534
          %s536 = smul.addr %s535, 128
          %s537 = scalar_lea.hbm %s3, %s536
          %s538 = sshll.u32 %s526, 4
          %s539 = int_to_ptr.vmem [resolvable:$true] %s538
          %544 = dma.vmem_to_hbm [thread:$0]  %s539, 1536, %s537, %s523, 384, 384, 24
        $region36: #{tpu_custom_call.1} parent=27 // pred_fallthru
          _
      $region28: #{tpu_custom_call.1} parent=5 // pred_fallthru
        _
      %p545 = scmp.le.s32.totalorder 2, %s12
      // Predicated region
      $region37: #{tpu_custom_call.1} parent=5 // pred_check
        %p546 = pneg %p545
      $region38: #{tpu_custom_call.1} parent=5 // pred_check_branch
        %548 = sbr.rel (%p546) target = $region40
      $region39: #{tpu_custom_call.1} parent=5 // pred_region
        %s549 = ssub.s32 %s12, 2
        // Predicated region
        $region41: #{tpu_custom_call.1} parent=39 // pred_check
          %p550 = pneg %p104
        $region42: #{tpu_custom_call.1} parent=39 // pred_check_branch
          %552 = sbr.rel (%p550) target = $region44
        $region43: #{tpu_custom_call.1} parent=39 // pred_region
          %s553 = sand.u32 %s89, 1
          %s554 = scalar_lea.sflag [#allocation6], %s553
          %s555 = sand.u32 %s89, 1
          %s556 = smul.addr %s555, 96
          %s557 = scalar_lea.vmem [#allocation5], %s556
          %558 = dma.done %s554, 1536
        $region44: #{tpu_custom_call.1} parent=39 // pred_fallthru
          _
      $region40: #{tpu_custom_call.1} parent=5 // pred_fallthru
        _
    $region6: #{tpu_custom_call.1} parent=1 // loop_footer
      %s16 = sadd.s32 1, %s12
    $region7: #{tpu_custom_call.1} parent=1 // loop_footer_branch
      %11 = sbr.rel target = $region3
    $region8: #{tpu_custom_call.1} parent=1 // loop_exit
      _
    %559 = vsyncpa [#allocation6], 1
    %s560 = scalar_lea.sflag [#allocation6], 1
    %561 = vsyncpa %s560, 1
  %562 = vsyncmov [#allocation3]
  %s563 = vpop.sfrf %562
  %p564 = scmp.eq.s32.totalorder %s563, 0
  %p565 = pneg %p564
  %567 = shalt.err (%p565)

</llo_original>
